<compile_context>
chip_gen: v6e
topology: v6e:2x2x1
jax: 0.10.0
libtpu: 0.0.40
codegen_flags: <defaults>
</compile_context>

<pallas_src>
import functools
import math

import jax
import jax.numpy as jnp
from jax.experimental import pallas as pl
from jax.experimental.pallas import tpu as pltpu


# ------------------------------ sizing helpers ------------------------------

@functools.lru_cache(maxsize=None)
def _vmem_limit_bytes():
    """Scoped-VMEM budget: ~75% of physical VMEM, capped at 96 MiB."""
    cap = None
    try:
        cap = int(pltpu.get_tpu_info().vmem_capacity_bytes)
    except Exception:
        cap = None
    if not cap or cap <= 0:
        cap = 64 * 1024 * 1024          # conservative (v7x-sized) fallback
    return int(max(16 * 1024 * 1024, min((cap * 3) // 4, 96 * 1024 * 1024)))


def _pick_chunk(C, width, max_steps=64):
    """Lane width for in-kernel streamed loops (static unroll): ~64 KiB of f32
    live per step, >= 128 lanes, and at most `max_steps` unrolled steps."""
    if width <= 128:
        return int(width)
    c = max(128, ((64 * 1024) // (4 * max(C, 1))) // 128 * 128)
    min_c = -(-width // max_steps)                 # ceil(width / max_steps)
    min_c = -(-min_c // 128) * 128                 # round up to a lane multiple
    return int(min(max(c, min_c), width))


def _choose_lane_tile(C, HW, itemsize, target_block_bytes):
    """Largest 128-multiple lane tile with C*tile*itemsize <= target_block_bytes."""
    if HW <= 128:
        return int(HW)
    cap = (target_block_bytes // max(1, C * itemsize)) // 128 * 128
    cap = max(128, cap)
    return int(min(cap, (HW // 128) * 128))


# ------------------------------ in-kernel helpers ------------------------------

def _accumulate_lanes(x_ref, acc_ref, width):
    """acc_ref (C, acc_w) += lane-chunked partial sums of x_ref[:, :width]."""
    acc_w = acc_ref.shape[1]
    n_full = width // acc_w
    rem = width - n_full * acc_w
    if n_full:
        part = x_ref[:, 0:acc_w].astype(jnp.float32)
        for j in range(1, n_full):
            part = part + x_ref[:, j * acc_w:(j + 1) * acc_w].astype(jnp.float32)
        acc_ref[...] += part
    if rem:
        tail = x_ref[:, n_full * acc_w:width].astype(jnp.float32)
        acc_ref[:, 0:1] += jnp.sum(tail, axis=1, keepdims=True)


def _channel_conv_sigmoid(y, w_ref, C):
    """Conv1d(1,1,k=3,pad=1) along channels + sigmoid on a (C, 1) pooled vector."""
    c_idx = jax.lax.broadcasted_iota(jnp.int32, (C, 1), 0)
    y_prev = jnp.where(c_idx == 0, 0.0, pltpu.roll(y, shift=1, axis=0))
    y_next = jnp.where(c_idx == C - 1, 0.0, pltpu.roll(y, shift=C - 1, axis=0))
    conv = w_ref[0] * y_prev + w_ref[1] * y + w_ref[2] * y_next + w_ref[3]
    return jax.nn.sigmoid(conv)


def _scale_lanes(x_ref, o_ref, att, width, chunk):
    """o_ref[:, :width] = x_ref[:, :width] * att, streamed in lane chunks."""
    n_full = width // chunk
    for j in range(n_full):
        sl = slice(j * chunk, (j + 1) * chunk)
        o_ref[:, sl] = (x_ref[:, sl].astype(jnp.float32) * att).astype(o_ref.dtype)
    if width % chunk:
        sl = slice(n_full * chunk, width)
        o_ref[:, sl] = (x_ref[:, sl].astype(jnp.float32) * att).astype(o_ref.dtype)


# ------------------------------ fused (small-slab) kernel ------------------------------

def _make_fused_kernel(C, HW):
    inv_hw = 1.0 / float(HW)

    def kernel(w_ref, x_ref, o_ref, acc_ref):
        # w_ref: SMEM (4,) = [w0, w1, w2, bias]; x_ref/o_ref: (C, HW); acc_ref: (C, chunk)
        acc_ref[...] = jnp.zeros_like(acc_ref)
        _accumulate_lanes(x_ref, acc_ref, HW)                        # streamed GAP
        y = jnp.sum(acc_ref[...], axis=1, keepdims=True) * inv_hw    # (C, 1)
        att = _channel_conv_sigmoid(y, w_ref, C)
        _scale_lanes(x_ref, o_ref, att, HW, acc_ref.shape[1])        # streamed scale

    return kernel


# ------------------------------ tiled single-call kernel ------------------------------

def _make_tiled_kernel(C, HW, t, n_t):
    inv_hw = 1.0 / float(HW)
    last_w = HW - (n_t - 1) * t        # valid lanes in the last HW tile

    def kernel(w_ref, x_ref, o_ref, acc_ref, att_ref):
        p = pl.program_id(1)           # 0: GAP-reduction sweep, 1: scaling sweep
        j = pl.program_id(2)           # HW-tile index within the sweep
        is_reduce = p == 0

        @pl.when(jnp.logical_and(is_reduce, j == 0))
        def _():
            acc_ref[...] = jnp.zeros_like(acc_ref)

        if n_t > 1:
            @pl.when(jnp.logical_and(is_reduce, j < n_t - 1))
            def _():
                _accumulate_lanes(x_ref, acc_ref, t)

        @pl.when(jnp.logical_and(is_reduce, j == n_t - 1))
        def _():
            # last tile: read only its in-bounds lanes, then conv + sigmoid in-kernel
            _accumulate_lanes(x_ref, acc_ref, last_w)
            y = jnp.sum(acc_ref[...], axis=1, keepdims=True) * inv_hw
            att_ref[...] = _channel_conv_sigmoid(y, w_ref, C)

        @pl.when(p == 1)
        def _():
            # out-of-bounds lanes of the ragged last tile are masked by Pallas writeback
            _scale_lanes(x_ref, o_ref, att_ref[...], t, acc_ref.shape[1])

    return kernel


# ------------------------------ fallback (C % 8 != 0) kernels ------------------------------

def _make_gap_kernel(HW, t):
    ragged = (HW % t) != 0

    def kernel(x_ref, sum_ref):
        i = pl.program_id(1)

        @pl.when(i == 0)
        def _():
            sum_ref[...] = jnp.zeros_like(sum_ref)

        x = x_ref[...].astype(jnp.float32)
        if ragged:
            lane = jax.lax.broadcasted_iota(jnp.int32, x.shape, 1)
            x = jnp.where(i * t + lane < HW, x, 0.0)
        sum_ref[...] += jnp.sum(x, axis=1, keepdims=True)

    return kernel


def _scale_kernel(att_ref, x_ref, o_ref):
    o_ref[...] = (x_ref[...].astype(jnp.float32) * att_ref[...]).astype(o_ref.dtype)


# ------------------------------ wrapper ------------------------------

def eca_attention(x, conv_w, conv_b, *, fused_max_bytes=None,
                  target_block_bytes=None, lane_tile=None):
    """ECA forward.  x: (B, C, H, W); conv_w: (3,); conv_b: scalar."""
    B, C, H, W = x.shape
    HW = H * W
    x3 = x.reshape(B, C, HW)
    itemsize = x3.dtype.itemsize
    conv_w = conv_w.reshape(3).astype(jnp.float32)
    conv_b = jnp.reshape(conv_b, ()).astype(jnp.float32)
    wvec = jnp.concatenate([conv_w, jnp.reshape(conv_b, (1,))])       # (4,) -> SMEM

    vmem_limit = _vmem_limit_bytes()
    if fused_max_bytes is None:
        # 2 input + 2 output double-buffered slabs must fit with headroom.
        fused_max_bytes = vmem_limit // 5
    if target_block_bytes is None:
        # 4 double-buffered (C, t) blocks + scratch must fit with headroom.
        target_block_bytes = min(8 * 1024 * 1024, vmem_limit // 7)

    aligned_c = (C % 8 == 0)
    slab_bytes = C * HW * itemsize

    # ---------- fused single-step path: 1 read + 1 write of x ----------
    if aligned_c and lane_tile is None and slab_bytes <= fused_max_bytes:
        out3 = pl.pallas_call(
            _make_fused_kernel(C, HW),
            out_shape=jax.ShapeDtypeStruct((B, C, HW), x3.dtype),
            grid_spec=pltpu.PrefetchScalarGridSpec(
                num_scalar_prefetch=0,
                grid=(B,),
                in_specs=[
                    pl.BlockSpec(memory_space=pltpu.MemorySpace.SMEM),
                    pl.BlockSpec((pl.Squeezed(), C, HW), lambda b: (b, 0, 0)),
                ],
                out_specs=pl.BlockSpec((pl.Squeezed(), C, HW), lambda b: (b, 0, 0)),
                scratch_shapes=[pltpu.VMEM((C, _pick_chunk(C, HW)), jnp.float32)],
            ),
            compiler_params=pltpu.CompilerParams(
                dimension_semantics=("parallel",),
                vmem_limit_bytes=vmem_limit,
            ),
        )(wvec, x3)
        return out3.reshape(B, C, H, W)

    t = int(lane_tile) if lane_tile is not None else _choose_lane_tile(
        C, HW, itemsize, target_block_bytes)
    n_t = int(pl.cdiv(HW, t))

    # ---------- tiled single-call path: GAP sweep + in-kernel conv/sigmoid + scale sweep ----------
    if aligned_c:
        # TODO(synk): on v7x with B == 1 the 'parallel' batch axis leaves one
        # TensorCore idle; split the GAP sweep across the two cores (partial
        # sums combined before the conv) for that case.
        out3 = pl.pallas_call(
            _make_tiled_kernel(C, HW, t, n_t),
            out_shape=jax.ShapeDtypeStruct((B, C, HW), x3.dtype),
            grid_spec=pltpu.PrefetchScalarGridSpec(
                num_scalar_prefetch=0,
                grid=(B, 2, n_t),
                in_specs=[
                    pl.BlockSpec(memory_space=pltpu.MemorySpace.SMEM),
                    pl.BlockSpec((pl.Squeezed(), C, t), lambda b, p, j: (b, 0, j)),
                ],
                # During the reduction sweep (p == 0) the output block index is
                # pinned at 0, so no garbage block is ever written back to HBM.
                out_specs=pl.BlockSpec((pl.Squeezed(), C, t),
                                       lambda b, p, j: (b, 0, j * p)),
                scratch_shapes=[
                    pltpu.VMEM((C, _pick_chunk(C, t)), jnp.float32),   # lane-dense GAP acc
                    pltpu.VMEM((C, 1), jnp.float32),                   # attention weights
                ],
            ),
            compiler_params=pltpu.CompilerParams(
                dimension_semantics=("parallel", "arbitrary", "arbitrary"),
                vmem_limit_bytes=vmem_limit,
            ),
        )(wvec, x3)
        return out3.reshape(B, C, H, W)

    # ---------- fallback: C not a multiple of 8 -> two passes + JAX conv glue ----------
    sums = pl.pallas_call(
        _make_gap_kernel(HW, t),
        out_shape=jax.ShapeDtypeStruct((B, C, 1), jnp.float32),
        grid_spec=pltpu.PrefetchScalarGridSpec(
            num_scalar_prefetch=0,
            grid=(B, n_t),
            in_specs=[pl.BlockSpec((pl.Squeezed(), C, t), lambda b, i: (b, 0, i))],
            out_specs=pl.BlockSpec((pl.Squeezed(), C, 1), lambda b, i: (b, 0, 0)),
        ),
        compiler_params=pltpu.CompilerParams(
            dimension_semantics=("parallel", "arbitrary"),
            vmem_limit_bytes=vmem_limit,
        ),
    )(x3)
    y = sums[:, :, 0] * (1.0 / HW)
    ypad = jnp.pad(y, ((0, 0), (1, 1)))
    conv = (conv_w[0] * ypad[:, :-2] + conv_w[1] * ypad[:, 1:-1]
            + conv_w[2] * ypad[:, 2:] + conv_b)
    att = jax.nn.sigmoid(conv)[:, :, None].astype(jnp.float32)
    out3 = pl.pallas_call(
        _scale_kernel,
        out_shape=jax.ShapeDtypeStruct((B, C, HW), x3.dtype),
        grid_spec=pltpu.PrefetchScalarGridSpec(
            num_scalar_prefetch=0,
            grid=(B, n_t),
            in_specs=[
                pl.BlockSpec((pl.Squeezed(), C, 1), lambda b, i: (b, 0, 0)),
                pl.BlockSpec((pl.Squeezed(), C, t), lambda b, i: (b, 0, i)),
            ],
            out_specs=pl.BlockSpec((pl.Squeezed(), C, t), lambda b, i: (b, 0, i)),
        ),
        compiler_params=pltpu.CompilerParams(
            dimension_semantics=("parallel", "parallel"),
            vmem_limit_bytes=vmem_limit,
        ),
    )(att, x3)
    return out3.reshape(B, C, H, W)


# ------------------------------ reference & test ------------------------------

def eca_attention_ref(x, conv_w, conv_b):
    """Pure-JAX reference matching the PyTorch forward."""
    y = jnp.mean(x, axis=(2, 3))                          # (B, C)
    ypad = jnp.pad(y, ((0, 0), (1, 1)))
    conv = (conv_w[0] * ypad[:, :-2] + conv_w[1] * ypad[:, 1:-1]
            + conv_w[2] * ypad[:, 2:] + conv_b)
    att = jax.nn.sigmoid(conv)                            # (B, C)
    return x * att[:, :, None, None]


if __name__ == "__main__":
    key = jax.random.PRNGKey(0)
    kx, kw, kb, kx2, kx3 = jax.random.split(key, 5)

    # Deterministic Conv1d(1, 1, k=3, pad=1) parameters (PyTorch-style bound 1/sqrt(3)).
    bound = 1.0 / math.sqrt(3.0)
    conv_w = jax.random.uniform(kw, (3,), minval=-bound, maxval=bound, dtype=jnp.float32)
    conv_b = jax.random.uniform(kb, (), minval=-bound, maxval=bound, dtype=jnp.float32)

    # Case 1: lane-aligned HW, aligned C -> fully fused single-step kernel.
    x1 = jax.random.normal(kx, (2, 8, 16, 16), dtype=jnp.float32)
    ref1 = eca_attention_ref(x1, conv_w, conv_b)
    out1 = jax.block_until_ready(eca_attention(x1, conv_w, conv_b))
    assert out1.shape == x1.shape
    assert jnp.allclose(out1, ref1, rtol=1e-5, atol=1e-5), "fused path mismatch"

    # Case 2: same input forced down the single-call tiled path (2 HW tiles).
    out2 = jax.block_until_ready(
        eca_attention(x1, conv_w, conv_b, fused_max_bytes=0, lane_tile=128))
    assert jnp.allclose(out2, ref1, rtol=1e-5, atol=1e-5), "tiled path mismatch"

    # Case 3: ragged HW (14*14 = 196, not a multiple of 128) on both paths.
    x3 = jax.random.normal(kx2, (2, 16, 14, 14), dtype=jnp.float32)
    ref3 = eca_attention_ref(x3, conv_w, conv_b)
    out3a = jax.block_until_ready(eca_attention(x3, conv_w, conv_b))
    out3b = jax.block_until_ready(
        eca_attention(x3, conv_w, conv_b, fused_max_bytes=0, lane_tile=128))
    assert jnp.allclose(out3a, ref3, rtol=1e-5, atol=1e-5), "fused ragged mismatch"
    assert jnp.allclose(out3b, ref3, rtol=1e-5, atol=1e-5), "tiled ragged mismatch"

    # Case 4: channels not a multiple of 8 -> two-pass fallback path.
    x4 = jax.random.normal(kx3, (2, 6, 14, 14), dtype=jnp.float32)
    ref4 = eca_attention_ref(x4, conv_w, conv_b)
    out4 = jax.block_until_ready(eca_attention(x4, conv_w, conv_b))
    assert jnp.allclose(out4, ref4, rtol=1e-5, atol=1e-5), "fallback path mismatch"

    print("KERNEL_OK")
</pallas_src>

<mosaic_0001>
module attributes {stable_mosaic.version = 11 : i64} {
  func.func @kernel(%arg0: i32, %arg1: memref<4xf32, #tpu.memory_space<smem>>, %arg2: memref<1x8x256xf32, #tpu.memory_space<vmem>>, %arg3: memref<1x8x256xf32, #tpu.memory_space<vmem>>, %arg4: memref<8x256xf32, #tpu.memory_space<vmem>>) attributes {dimension_semantics = [#tpu.dimension_semantics<parallel>], iteration_bounds = array<i64: 2>, scalar_prefetch = 0 : i64, scratch_operands = 1 : i64, tpu.core_type = #tpu.core_type<tc>, window_params = [{transform_indices = @transform_0, window_bounds = array<i64: 4>}, {transform_indices = @transform_1, window_bounds = array<i64: 1, 8, 256>}, {transform_indices = @transform_2, window_bounds = array<i64: 1, 8, 256>}]} {
    %cst = arith.constant 0.000000e+00 : f32
    %0 = vector.broadcast %cst : f32 to vector<8x256xf32>
    %c0 = arith.constant 0 : index
    %c0_0 = arith.constant 0 : index
    %1 = vector.load %arg4[%c0, %c0_0] : memref<8x256xf32, #tpu.memory_space<vmem>>, vector<8x256xf32>
    tpu.vector_store %arg4[%c0, %c0_0], %0 {strides = array<i32>} : memref<8x256xf32, #tpu.memory_space<vmem>>, vector<8x256xf32>,
    %c0_1 = arith.constant 0 : index
    %c0_2 = arith.constant 0 : index
    %c0_3 = arith.constant 0 : index
    %2 = vector.load %arg2[%c0_1, %c0_2, %c0_3] : memref<1x8x256xf32, #tpu.memory_space<vmem>>, vector<1x8x256xf32>
    %3 = vector.shape_cast %2 : vector<1x8x256xf32> to vector<8x256xf32>
    %c0_4 = arith.constant 0 : index
    %c0_5 = arith.constant 0 : index
    %4 = vector.load %arg4[%c0_4, %c0_5] : memref<8x256xf32, #tpu.memory_space<vmem>>, vector<8x256xf32>
    %5 = arith.addf %4, %3 : vector<8x256xf32>
    %c0_6 = arith.constant 0 : index
    %c0_7 = arith.constant 0 : index
    %6 = vector.load %arg4[%c0_6, %c0_7] : memref<8x256xf32, #tpu.memory_space<vmem>>, vector<8x256xf32>
    tpu.vector_store %arg4[%c0_6, %c0_7], %5 {strides = array<i32>} : memref<8x256xf32, #tpu.memory_space<vmem>>, vector<8x256xf32>,
    %c0_8 = arith.constant 0 : index
    %c0_9 = arith.constant 0 : index
    %7 = vector.load %arg4[%c0_8, %c0_9] : memref<8x256xf32, #tpu.memory_space<vmem>>, vector<8x256xf32>
    %cst_10 = arith.constant dense<0.000000e+00> : vector<8xf32>
    %8 = vector.multi_reduction <add>, %7, %cst_10 [1] : vector<8x256xf32> to vector<8xf32>
    %9 = vector.shape_cast %8 : vector<8xf32> to vector<8x1xf32>
    %cst_11 = arith.constant 3.906250e-03 : f32
    %10 = vector.broadcast %cst_11 : f32 to vector<8x1xf32>
    %11 = arith.mulf %9, %10 : vector<8x1xf32>
    %12 = tpu.iota {dimensions = array<i32: 0>} : vector<8x1xi32>
    %c0_i32 = arith.constant 0 : i32
    %13 = vector.broadcast %c0_i32 : i32 to vector<8x1xi32>
    %14 = arith.cmpi eq, %12, %13 : vector<8x1xi32>
    %c1_i32 = arith.constant 1 : i32
    %15 = tpu.dynamic_rotate %11 by %c1_i32 dim 0 : vector<8x1xf32>, i32 -> vector<8x1xf32>
    %cst_12 = arith.constant 0.000000e+00 : f32
    %16 = vector.broadcast %cst_12 : f32 to vector<8x1xf32>
    %17 = arith.select %14, %16, %15 : vector<8x1xi1>, vector<8x1xf32>
    %c7_i32 = arith.constant 7 : i32
    %18 = vector.broadcast %c7_i32 : i32 to vector<8x1xi32>
    %19 = arith.cmpi eq, %12, %18 : vector<8x1xi32>
    %c7_i32_13 = arith.constant 7 : i32
    %20 = tpu.dynamic_rotate %11 by %c7_i32_13 dim 0 : vector<8x1xf32>, i32 -> vector<8x1xf32>
    %cst_14 = arith.constant 0.000000e+00 : f32
    %21 = vector.broadcast %cst_14 : f32 to vector<8x1xf32>
    %22 = arith.select %19, %21, %20 : vector<8x1xi1>, vector<8x1xf32>
    %c0_15 = arith.constant 0 : index
    %23 = memref.load %arg1[%c0_15] : memref<4xf32, #tpu.memory_space<smem>>
    %24 = vector.broadcast %23 : f32 to vector<8x1xf32>
    %25 = arith.mulf %24, %17 : vector<8x1xf32>
    %c1 = arith.constant 1 : index
    %26 = memref.load %arg1[%c1] : memref<4xf32, #tpu.memory_space<smem>>
    %27 = vector.broadcast %26 : f32 to vector<8x1xf32>
    %28 = arith.mulf %27, %11 : vector<8x1xf32>
    %29 = arith.addf %25, %28 : vector<8x1xf32>
    %c2 = arith.constant 2 : index
    %30 = memref.load %arg1[%c2] : memref<4xf32, #tpu.memory_space<smem>>
    %31 = vector.broadcast %30 : f32 to vector<8x1xf32>
    %32 = arith.mulf %31, %22 : vector<8x1xf32>
    %33 = arith.addf %29, %32 : vector<8x1xf32>
    %c3 = arith.constant 3 : index
    %34 = memref.load %arg1[%c3] : memref<4xf32, #tpu.memory_space<smem>>
    %35 = vector.broadcast %34 : f32 to vector<8x1xf32>
    %36 = arith.addf %33, %35 : vector<8x1xf32>
    %37 = arith.negf %36 : vector<8x1xf32>
    %38 = math.exp %37 : vector<8x1xf32>
    %cst_16 = arith.constant 1.000000e+00 : f32
    %39 = vector.broadcast %cst_16 : f32 to vector<8x1xf32>
    %40 = arith.addf %39, %38 : vector<8x1xf32>
    %41 = arith.divf %39, %40 : vector<8x1xf32>
    %c0_17 = arith.constant 0 : index
    %c0_18 = arith.constant 0 : index
    %c0_19 = arith.constant 0 : index
    %42 = vector.load %arg2[%c0_17, %c0_18, %c0_19] : memref<1x8x256xf32, #tpu.memory_space<vmem>>, vector<1x8x256xf32>
    %43 = vector.shape_cast %42 : vector<1x8x256xf32> to vector<8x256xf32>
    %44 = vector.broadcast %41 : vector<8x1xf32> to vector<8x256xf32>
    %45 = arith.mulf %43, %44 : vector<8x256xf32>
    %c0_20 = arith.constant 0 : index
    %c0_21 = arith.constant 0 : index
    %c0_22 = arith.constant 0 : index
    %46 = vector.load %arg3[%c0_20, %c0_21, %c0_22] : memref<1x8x256xf32, #tpu.memory_space<vmem>>, vector<1x8x256xf32>
    %47 = vector.shape_cast %46 : vector<1x8x256xf32> to vector<8x256xf32>
    %48 = vector.shape_cast %45 : vector<8x256xf32> to vector<1x8x256xf32>
    tpu.vector_store %arg3[%c0_20, %c0_21, %c0_22], %48 {strides = array<i32>} : memref<1x8x256xf32, #tpu.memory_space<vmem>>, vector<1x8x256xf32>,
    return
  }
  func.func @transform_0(%arg0: i32) -> i32 {
    %c0_i32 = arith.constant 0 : i32
    %c0_i32_0 = arith.constant 0 : i32
    return %c0_i32 : i32
  }
  func.func @transform_1(%arg0: i32) -> (i32, i32, i32) {
    %c0_i32 = arith.constant 0 : i32
    %c0_i32_0 = arith.constant 0 : i32
    %c0_i32_1 = arith.constant 0 : i32
    return %arg0, %c0_i32, %c0_i32_0 : i32, i32, i32
  }
  func.func @transform_2(%arg0: i32) -> (i32, i32, i32) {
    %c0_i32 = arith.constant 0 : i32
    %c0_i32_0 = arith.constant 0 : i32
    %c0_i32_1 = arith.constant 0 : i32
    return %arg0, %c0_i32, %c0_i32_0 : i32, i32, i32
  }
}

</mosaic_0001>

<llo_original>
// kernel: tpu_custom_call.1
$region0: #{tpu_custom_call.1}
  #allocation0 [shape = 'u32[]', space=smem, size = 0x4, offset = 0x4, fixed_abs, tag = 'smem constant byte address 0x4 - core index']
  #allocation1 [shape = 'u32[144,128]{1,0:T(1,128)}', space=vmem, size = 0x12000, scoped, tag = 'internal scratch']
  #allocation2 [shape = 'f32[8,256]{1,0:T(8,128)}', space=vmem, size = 0x2000, scoped, tag = 'scratch operand']
  %s0 = inlined_call_operand.hbm [shape: f32[4], index: 0, kind: input, shape index: {}]
  %s1 = inlined_call_operand.hbm [shape: f32[2,8,256], index: 1, kind: input, shape index: {}]
  %s2 = inlined_call_operand.hbm [shape: f32[2,8,256], index: 2, kind: output, shape index: {}]
  %s3 = sld [smem:[#allocation0]]
  $region49: #{tpu_custom_call.1} parent=0
    _
  %s5 = ssub.s32 1, %s3
  %s6 = scalar_select 0, %s5, %s3
  $region1: #{tpu_custom_call.1} parent=0
    #allocation3 [shape = 'u8[512]{0}', space=smem, size = 0x200, scoped, tag = 'input window, operand 0, single buffered']
    #allocation4 [shape = 's32[2]{0}', space=sflag, size = 0x8, scoped, tag = 'scoped memory for tpu_custom_call.1']
    #allocation5 [shape = 's32[2]{0}', space=sflag, size = 0x8, scoped, tag = 'scoped memory for tpu_custom_call.1']
    #allocation6 [shape = 's32[2]{0}', space=sflag, size = 0x8, scoped, tag = 'scoped memory for tpu_custom_call.1']
    #allocation7 [shape = 'u8[16384]{0}', space=vmem, size = 0x4000, scoped, tag = 'input window, operand 1']
    #allocation8 [shape = 'u8[16384]{0}', space=vmem, size = 0x4000, scoped, tag = 'output window, operand 0']
    %7 = vsyncpa [#allocation6], 0
    %8 = vsyncpa [#allocation4], 0
    %s9 = scalar_lea.sflag [#allocation4], 1
    %10 = vsyncpa %s9, 0
    %11 = vsyncpa [#allocation5], 0
    %s12 = scalar_lea.sflag [#allocation5], 1
    %13 = vsyncpa %s12, 0
    loop: start=0, step=1, limit=4
    $region2: #{tpu_custom_call.1} parent=1 // loop_pre_header
      _
    $region3: #{tpu_custom_call.1} parent=1 // loop_header
      %s15 = sphi 0, %s19
      %p16 = scmp.ge.s32.totalorder %s15, 4
      %s23 = sphi 0, %s23
      %s25 = sphi 0, %s23
      %s26 = sphi 0, %s25
      %s40 = sphi 0, %s26
      %s46 = sphi 0, %s48
      %s49 = sphi 0, %s46
      %s50 = sphi 0, %s49
      %s66 = sphi 0, %s50
      %s72 = sphi 0, %s74
      %s75 = sphi 0, %s72
      %s76 = sphi 0, %s75
      %s92 = sphi 0, %s76
    $region4: #{tpu_custom_call.1} parent=1 // loop_header_branch
      %18 = sbr.rel (%p16) target = $region8
    $region5: #{tpu_custom_call.1} parent=1 // loop_body
      %s20 = ssub.s32 %s15, 1
      %s21 = ssub.s32 %s15, 2
      %s22 = sadd.s32 %s15, 1
      %s24 = sadd.s32 %s23, 1
      %p27 = scmp.eq.s32.totalorder %s15, 1
      %p28 = scmp.ne.s32.totalorder %s23, %s25
      %p29 = scmp.eq.s32.totalorder %s15, 0
      %p30 = por %p28, %p29
      %p31 = scmp.ne.s32.totalorder %s23, %s25
      %p32 = scmp.eq.s32.totalorder %s20, 1
      %p33 = por %p31, %p32
      %p34 = scmp.ne.s32.totalorder %s25, %s26
      %p35 = scmp.eq.s32.totalorder %s20, 0
      %p36 = por %p34, %p35
      %p37 = scmp.ne.s32.totalorder %s25, %s26
      %p38 = scmp.eq.s32.totalorder %s21, 1
      %p39 = por %p37, %p38
      %p41 = scmp.ne.s32.totalorder %s26, %s40
      %p42 = scmp.eq.s32.totalorder %s21, 0
      %p43 = por %p41, %p42
      %s44 = ssub.s32 %s15, %s22
      %p45 = scmp.eq.s32.totalorder %s44, 0
      %s47 = sadd.s32 %s46, 1
      %s48 = scalar_select %p45, %s46, %s47
      %p51 = pneg %p45
      %p52 = scmp.eq.s32.totalorder %s15, 1
      %p53 = por %p51, %p52
      %p54 = scmp.ne.s32.totalorder %s46, %s49
      %p55 = scmp.eq.s32.totalorder %s15, 0
      %p56 = por %p54, %p55
      %p57 = scmp.ne.s32.totalorder %s46, %s49
      %p58 = scmp.eq.s32.totalorder %s20, 1
      %p59 = por %p57, %p58
      %p60 = scmp.ne.s32.totalorder %s49, %s50
      %p61 = scmp.eq.s32.totalorder %s20, 0
      %p62 = por %p60, %p61
      %p63 = scmp.ne.s32.totalorder %s49, %s50
      %p64 = scmp.eq.s32.totalorder %s21, 1
      %p65 = por %p63, %p64
      %p67 = scmp.ne.s32.totalorder %s50, %s66
      %p68 = scmp.eq.s32.totalorder %s21, 0
      %p69 = por %p67, %p68
      %s70 = ssub.s32 %s15, %s22
      %p71 = scmp.eq.s32.totalorder %s70, 0
      %s73 = sadd.s32 %s72, 1
      %s74 = scalar_select %p71, %s72, %s73
      %p77 = pneg %p71
      %p78 = scmp.eq.s32.totalorder %s15, 1
      %p79 = por %p77, %p78
      %p80 = scmp.ne.s32.totalorder %s72, %s75
      %p81 = scmp.eq.s32.totalorder %s15, 0
      %p82 = por %p80, %p81
      %p83 = scmp.ne.s32.totalorder %s72, %s75
      %p84 = scmp.eq.s32.totalorder %s20, 1
      %p85 = por %p83, %p84
      %p86 = scmp.ne.s32.totalorder %s75, %s76
      %p87 = scmp.eq.s32.totalorder %s20, 0
      %p88 = por %p86, %p87
      %p89 = scmp.ne.s32.totalorder %s75, %s76
      %p90 = scmp.eq.s32.totalorder %s21, 1
      %p91 = por %p89, %p90
      %p93 = scmp.ne.s32.totalorder %s76, %s92
      %p94 = scmp.eq.s32.totalorder %s21, 0
      %p95 = por %p93, %p94
      %p96 = scmp.le.s32.totalorder 1, %s15
      %p97 = scmp.lt.s32.totalorder %s15, 3
      %p98 = pnand %p96, %p97
      %p99 = pneg %p98
      // Predicated region
      $region9: #{tpu_custom_call.1} parent=5 // pred_check
        _
      $region10: #{tpu_custom_call.1} parent=5 // pred_check_branch
        %101 = sbr.rel (%p98) target = $region12
      $region11: #{tpu_custom_call.1} parent=5 // pred_region
        %s102 = ssub.s32 %s15, 1
        // Predicated region
        $region13: #{tpu_custom_call.1} parent=11 // pred_check
          %p103 = pneg %p36
        $region14: #{tpu_custom_call.1} parent=11 // pred_check_branch
          %105 = sbr.rel (%p103) target = $region16
        $region15: #{tpu_custom_call.1} parent=11 // pred_region
          %s107 = ssub.s32 16, 16
          %108 = vsyncadd [#allocation6], %s107
          %111 = dma.hbm_to_smem %s0, 16, [#allocation3], [#allocation6]
        $region16: #{tpu_custom_call.1} parent=11 // pred_fallthru
          _
      $region12: #{tpu_custom_call.1} parent=5 // pred_fallthru
        _
      %p112 = scmp.lt.s32.totalorder %s15, 2
      // Predicated region
      $region17: #{tpu_custom_call.1} parent=5 // pred_check
        %p113 = pneg %p112
      $region18: #{tpu_custom_call.1} parent=5 // pred_check_branch
        %115 = sbr.rel (%p113) target = $region20
      $region19: #{tpu_custom_call.1} parent=5 // pred_region
        // Predicated region
        $region21: #{tpu_custom_call.1} parent=19 // pred_check
          %p116 = pneg %p56
        $region22: #{tpu_custom_call.1} parent=19 // pred_check_branch
          %118 = sbr.rel (%p116) target = $region24
        $region23: #{tpu_custom_call.1} parent=19 // pred_region
          %s119 = sand.u32 %s46, 1
          %s120 = scalar_lea.sflag [#allocation4], %s119
          %s121 = sand.u32 %s46, 1
          %s122 = smul.addr %s121, 16
          %s123 = scalar_lea.vmem [#allocation7], %s122
          %s125 = ssub.s32 256, 256
          %126 = vsyncadd %s120, %s125
          %s127 = smul.addr %s15, 2
          %s128 = smul.addr %s127, 128
          %s129 = scalar_lea.hbm %s1, %s128
          %s131 = sshll.u32 %s123, 4
          %s132 = int_to_ptr.vmem [resolvable:$true] %s131
          %134 = dma.hbm_to_vmem [thread:$0]  %s129, 256, %s132, %s120
        $region24: #{tpu_custom_call.1} parent=19 // pred_fallthru
          _
      $region20: #{tpu_custom_call.1} parent=5 // pred_fallthru
        _
      %p135 = scmp.le.s32.totalorder 1, %s15
      %p136 = scmp.lt.s32.totalorder %s15, 3
      %p137 = pnand %p135, %p136
      %p138 = pneg %p137
      // Predicated region
      $region25: #{tpu_custom_call.1} parent=5 // pred_check
        _
      $region26: #{tpu_custom_call.1} parent=5 // pred_check_branch
        %140 = sbr.rel (%p137) target = $region28
      $region27: #{tpu_custom_call.1} parent=5 // pred_region
        %s141 = ssub.s32 %s15, 1
        // Predicated region
        $region29: #{tpu_custom_call.1} parent=27 // pred_check
          %p142 = pneg %p36
        $region30: #{tpu_custom_call.1} parent=27 // pred_check_branch
          %144 = sbr.rel (%p142) target = $region32
        $region31: #{tpu_custom_call.1} parent=27 // pred_region
          %145 = dma.done [#allocation6], 16
        $region32: #{tpu_custom_call.1} parent=27 // pred_fallthru
          _
        %s146 = sand.u32 %s49, 1
        %s147 = scalar_lea.sflag [#allocation4], %s146
        %s148 = sand.u32 %s49, 1
        %s149 = smul.addr %s148, 16
        %s150 = scalar_lea.vmem [#allocation7], %s149
        // Predicated region
        $region33: #{tpu_custom_call.1} parent=27 // pred_check
          %p151 = pneg %p62
        $region34: #{tpu_custom_call.1} parent=27 // pred_check_branch
          %153 = sbr.rel (%p151) target = $region36
        $region35: #{tpu_custom_call.1} parent=27 // pred_region
          %154 = dma.done %s147, 256
        $region36: #{tpu_custom_call.1} parent=27 // pred_fallthru
          _
        %155 = sfence
        %p156 = pneg %p36
        %p157 = pneg %p33
        %s158 = sand.u32 %s49, 1
        %s159 = scalar_lea.sflag [#allocation4], %s158
        %s160 = sand.u32 %s49, 1
        %s161 = smul.addr %s160, 16
        %s162 = scalar_lea.vmem [#allocation7], %s161
        %p163 = pneg %p62
        %p164 = pneg %p59
        %p165 = pneg %p88
        %p166 = pneg %p85
        %s167 = sand.u32 %s75, 1
        %s168 = scalar_lea.sflag [#allocation5], %s167
        %s169 = sand.u32 %s75, 1
        %s170 = smul.addr %s169, 16
        %s171 = scalar_lea.vmem [#allocation8], %s170
        %172 = vst [vmem:[#allocation2] sm:$0xff] 0.0
        %173 = vst [vmem:[#allocation2 + $0x8] sm:$0xff] 0.0
        %v174 = vld [vmem:[%s150] sm:$0xff]
        %v175 = vld [vmem:[%s150 + $0x8] sm:$0xff]
        %v176 = vld [vmem:[#allocation2] sm:$0xff]
        %v177 = vld [vmem:[#allocation2 + $0x8] sm:$0xff]
        %v178 = vadd.f32 %v176, %v174
        %v179 = vadd.f32 %v177, %v175
        %180 = vst [vmem:[#allocation2] sm:$0xff] %v178
        %181 = vst [vmem:[#allocation2 + $0x8] sm:$0xff] %v179
        %v182 = vld [vmem:[#allocation2] sm:$0xff]
        %v183 = vld [vmem:[#allocation2 + $0x8] sm:$0xff]
        %v184 = vadd.f32 %v182, %v183
        %185 = vadd.xlane.f32.xlu0 %v184
        %v186 = vpop.xlane.xlu0 %185
        %v187 = vmul.f32 %v186, 0.00390625
        %v188 = vlaneseq
        %v189 = vshrl.u32 %v188, 7
        %vm190 = vcmp.eq.s32.totalorder %v189, 0
        %v191 = vrot.slane %v187, 7
        %v192 = vsel %vm190, 0.0, %v191
        %vm193 = vcmp.eq.s32.totalorder %v189, 7
        %v194 = vrot.slane %v187, 1
        %v195 = vsel %vm193, 0.0, %v194
        %s196 = sld [smem:[#allocation3]]
        %v197 = vstv %s196
        %v198 = vmul.f32 %v197, %v192
        %s199 = sld [smem:[#allocation3 + $0x1]]
        %v200 = vstv %s199
        %v201 = vmul.f32 %v200, %v187
        %v202 = vadd.f32 %v198, %v201
        %s203 = sld [smem:[#allocation3 + $0x2]]
        %v204 = vstv %s203
        %v205 = vmul.f32 %v204, %v195
        %v206 = vadd.f32 %v202, %v205
        %s207 = sld [smem:[#allocation3 + $0x3]]
        %v208 = vstv %s207
        %v209 = vadd.f32 %v206, %v208
        %v210 = vxor.u32 %v209, 2147483648
        %v211 = vmul.f32 %v210, 1.442695
        %v212 = vpow.pop %v211
        %v213 = vadd.f32 %v212, 1.0
        %v214 = vrcp.pop %v213
        %v215 = vmul.f32 1.0, %v214
        %v216 = vld [vmem:[%s150] sm:$0xff]
        %v217 = vld [vmem:[%s150 + $0x8] sm:$0xff]
        %219 = vset.pattern.permute.xlu0 0
        %220 = vperm.xlu0 %219, %v215
        %v221 = vpop.permute.xlu0 %220
        %v223 = vmul.f32 %v216, %v221
        %v224 = vmul.f32 %v217, %v221
        %225 = vst [vmem:[%s171] sm:$0xff] %v223
        %226 = vst [vmem:[%s171 + $0x8] sm:$0xff] %v224
        %s227 = sand.u32 %s75, 1
        %s228 = scalar_lea.sflag [#allocation5], %s227
        %s229 = sand.u32 %s75, 1
        %s230 = smul.addr %s229, 16
        %s231 = scalar_lea.vmem [#allocation8], %s230
        // Predicated region
        $region37: #{tpu_custom_call.1} parent=27 // pred_check
          %p232 = pneg %p85
        $region38: #{tpu_custom_call.1} parent=27 // pred_check_branch
          %234 = sbr.rel (%p232) target = $region40
        $region39: #{tpu_custom_call.1} parent=27 // pred_region
          %s236 = ssub.s32 256, 256
          %237 = vsyncadd %s228, %s236
          %s238 = smul.addr %s20, 2
          %s239 = smul.addr %s238, 128
          %s240 = scalar_lea.hbm %s2, %s239
          %s242 = sshll.u32 %s231, 4
          %s243 = int_to_ptr.vmem [resolvable:$true] %s242
          %245 = dma.vmem_to_hbm [thread:$0]  %s243, 256, %s240, %s228
        $region40: #{tpu_custom_call.1} parent=27 // pred_fallthru
          _
      $region28: #{tpu_custom_call.1} parent=5 // pred_fallthru
        _
      %p246 = scmp.le.s32.totalorder 2, %s15
      // Predicated region
      $region41: #{tpu_custom_call.1} parent=5 // pred_check
        %p247 = pneg %p246
      $region42: #{tpu_custom_call.1} parent=5 // pred_check_branch
        %249 = sbr.rel (%p247) target = $region44
      $region43: #{tpu_custom_call.1} parent=5 // pred_region
        %s250 = ssub.s32 %s15, 2
        // Predicated region
        $region45: #{tpu_custom_call.1} parent=43 // pred_check
          %p251 = pneg %p91
        $region46: #{tpu_custom_call.1} parent=43 // pred_check_branch
          %253 = sbr.rel (%p251) target = $region48
        $region47: #{tpu_custom_call.1} parent=43 // pred_region
          %s254 = sand.u32 %s76, 1
          %s255 = scalar_lea.sflag [#allocation5], %s254
          %s256 = sand.u32 %s76, 1
          %s257 = smul.addr %s256, 16
          %s258 = scalar_lea.vmem [#allocation8], %s257
          %259 = dma.done %s255, 256
        $region48: #{tpu_custom_call.1} parent=43 // pred_fallthru
          _
      $region44: #{tpu_custom_call.1} parent=5 // pred_fallthru
        _
    $region6: #{tpu_custom_call.1} parent=1 // loop_footer
      %s19 = sadd.s32 1, %s15
    $region7: #{tpu_custom_call.1} parent=1 // loop_footer_branch
      %14 = sbr.rel target = $region3
    $region8: #{tpu_custom_call.1} parent=1 // loop_exit
      _
    %260 = vsyncpa [#allocation4], 1
    %s261 = scalar_lea.sflag [#allocation4], 1
    %262 = vsyncpa %s261, 1
    %263 = vsyncpa [#allocation5], 1
    %s264 = scalar_lea.sflag [#allocation5], 1
    %265 = vsyncpa %s264, 1
    %266 = vsyncpa [#allocation6], 1
    %s267 = scalar_lea.sflag [#allocation6], 1
    %268 = vsyncpa %s267, 1

</llo_original>
